<compile_context>
chip_gen: v7x
topology: tpu7x:2x2x1
jax: 0.10.0
libtpu: 0.0.40
codegen_flags: <defaults>
</compile_context>

<pallas_src>
from functools import partial

import jax
import jax.numpy as jnp
from jax.experimental import pallas as pl
from jax.experimental.pallas import tpu as pltpu


def _mh_rmsnorm_kernel(eps, d, k, x_ref, g_ref, o_ref):
    """x_ref / o_ref: (BHblk, TS, L); g_ref: (BHblk, 1, L); L == k * d."""
    xf = x_ref[...].astype(jnp.float32)
    sq = xf * xf

    if k > 1:
        # Lane-dense packing: each 128-lane row holds k tokens of d features
        # (segments of d lanes, d a power of two dividing 128).  Within-segment
        # butterfly all-reduce using XLU lane rotations: after log2(d) steps
        # every lane holds its token's sum of squares (exact f32 adds).
        L = k * d                                             # == 128
        lane = jax.lax.broadcasted_iota(jnp.int32, (1, 1, L), 2)
        s = sq
        shift = 1
        while shift < d:
            up = pltpu.roll(s, L - shift, axis=2)   # value from lane l + shift
            dn = pltpu.roll(s, shift, axis=2)       # value from lane l - shift
            s = s + jnp.where((lane & shift) == 0, up, dn)
            shift *= 2
        ms = s * (1.0 / d)            # per-token mean, already on all d lanes
    else:
        # Lane-sparse / wide-D fallback: plain cross-lane mean over the last
        # axis (D is either >= 128 or does not divide 128).
        ms = jnp.mean(sq, axis=-1, keepdims=True)

    inv = jax.lax.rsqrt(ms + eps)                             # EUP slot
    gf = g_ref[...].astype(jnp.float32) + 1.0                 # (BHblk, 1, L)
    o_ref[...] = (xf * inv * gf).astype(o_ref.dtype)


def _largest_divisor_leq(n, m):
    m = max(1, min(n, m))
    for cand in range(m, 0, -1):
        if n % cand == 0:
            return cand
    return 1


def multihead_rmsnorm(x, gamma, *, eps=None, block_bytes=None,
                      vmem_limit_bytes=None):
    """x: (B, H, S, D); gamma: (H, 1, D). Returns same shape/dtype as x."""
    assert x.ndim == 4
    B, H, S, D = x.shape
    assert gamma.shape == (H, 1, D)
    itemsize = jnp.dtype(x.dtype).itemsize

    # PyTorch nn.RMSNorm(dim, elementwise_affine=False, eps=None) uses
    # torch.finfo(x.dtype).eps; an explicit eps can be threaded through here.
    if eps is None:
        eps = float(jnp.finfo(x.dtype).eps)

    # ---- lane-dense packing for D < 128 ------------------------------------
    if D < 128 and 128 % D == 0 and S % (128 // D) == 0:
        k = 128 // D
    else:
        k = 1
    L = k * D
    Sp = S // k
    BH = B * H

    xr = x.reshape(BH, Sp, L)                      # contiguous, zero-cost
    g = jnp.tile(gamma, (1, 1, k)) if k > 1 else gamma          # (H, 1, L)
    g = jnp.broadcast_to(g[None], (B, H, 1, L)).reshape(BH, 1, L)

    # ---- VMEM limit / block budget (per-generation) ------------------------
    if vmem_limit_bytes is None:
        try:
            cap = int(pltpu.get_tpu_info().vmem_capacity_bytes)
        except Exception:
            cap = 64 * 1024 * 1024          # assume the smallest (v7x per-TC)
        vmem_limit_bytes = min(cap * 3 // 4, 96 * 1024 * 1024)
    vmem_limit_bytes = int(vmem_limit_bytes)
    if block_bytes is None:
        # (in + out) double-buffered = 4 blocks, plus ~4 f32-sized temporaries
        # (xf / running butterfly sum / roll operands).
        divisor = 4 + 16 // itemsize                 # f32 -> 8, bf16 -> 12
        block_bytes = max(
            512 * 1024,
            min(8 * 1024 * 1024, (vmem_limit_bytes * 3 // 4) // divisor))
    block_bytes = int(block_bytes)

    # ---- choose (bh_blk, ts) ------------------------------------------------
    sub = max(8, 32 // itemsize)            # seq-row alignment: 8 f32 / 16 bf16
    row_bytes = L * itemsize
    slab_bytes = Sp * row_bytes             # one (b, h) slab

    if slab_bytes <= block_bytes:
        # Full sequence per slab fits: fold as many (b, h) slabs as allowed.
        ts = Sp
        bh_blk = _largest_divisor_leq(BH, block_bytes // slab_bytes)
    else:
        # Tile the sequence axis of a single slab.
        bh_blk = 1
        ts = max(sub, (block_bytes // row_bytes) // sub * sub)
        ts = min(ts, Sp)
    ns = pl.cdiv(Sp, ts)

    # v7x: keep >=2 grid steps so both TensorCores get work.
    if BH // bh_blk == 1 and ns == 1:
        if BH >= 2:
            bh_blk = _largest_divisor_leq(BH, BH // 2)
        elif Sp >= 2 * sub:
            ts = (((Sp + 1) // 2) + sub - 1) // sub * sub
            ns = pl.cdiv(Sp, ts)
    grid = (BH // bh_blk, ns)

    kernel = partial(_mh_rmsnorm_kernel, eps, D, k)

    out = pl.pallas_call(
        kernel,
        out_shape=jax.ShapeDtypeStruct((BH, Sp, L), x.dtype),
        grid_spec=pltpu.PrefetchScalarGridSpec(
            num_scalar_prefetch=0,
            grid=grid,
            in_specs=[
                pl.BlockSpec((bh_blk, ts, L), lambda i, j: (i, j, 0)),
                pl.BlockSpec((bh_blk, 1, L), lambda i, j: (i, 0, 0)),
            ],
            out_specs=pl.BlockSpec((bh_blk, ts, L), lambda i, j: (i, j, 0)),
        ),
        compiler_params=pltpu.CompilerParams(
            # No cross-step accumulation -> all parallel (2-TC sharding on v7x).
            dimension_semantics=("parallel", "parallel"),
            vmem_limit_bytes=vmem_limit_bytes,
        ),
    )(xr, g)
    return out.reshape(B, H, S, D)


def multihead_rmsnorm_ref(x, gamma):
    eps = float(jnp.finfo(x.dtype).eps)
    xf = x.astype(jnp.float32)
    ms = jnp.mean(xf * xf, axis=-1, keepdims=True)
    y = xf * jax.lax.rsqrt(ms + eps)
    return (y * (gamma.astype(jnp.float32)[None] + 1.0)).astype(x.dtype)


if __name__ == "__main__":
    key = jax.random.PRNGKey(0)

    def _run(B, H, S, D, dtype, atol, rtol, **kw):
        kx, kg = jax.random.split(
            jax.random.fold_in(key, B * 1000003 + H * 10007 + S * 101 + D))
        x = jax.random.normal(kx, (B, H, S, D), dtype=jnp.float32).astype(dtype)
        # Module init is torch.zeros(heads, 1, dim); use small random values so
        # the gamma path is actually exercised.
        gamma = 0.1 * jax.random.normal(kg, (H, 1, D), dtype=jnp.float32)
        out = jax.block_until_ready(multihead_rmsnorm(x, gamma, **kw))
        ref = multihead_rmsnorm_ref(x, gamma)
        assert out.shape == x.shape and out.dtype == x.dtype
        assert jnp.allclose(out.astype(jnp.float32), ref.astype(jnp.float32),
                            atol=atol, rtol=rtol), (B, H, S, D, str(dtype))

    # Small shape implied by the module: lane-dense pack (k=4), bh folding.
    _run(2, 4, 8, 32, jnp.float32, 5e-5, 5e-5)
    # Seq-tiled path with a padded (cdiv) last tile, k=2 packing.
    _run(2, 4, 384, 64, jnp.float32, 5e-5, 5e-5, block_bytes=64 * 1024)
    # bf16: dtype-dependent eps, 16-row seq alignment, f32 internal math.
    _run(2, 4, 64, 32, jnp.bfloat16, 3e-2, 3e-2)
    # D == 128: already lane-dense, plain cross-lane mean path.
    _run(2, 2, 64, 128, jnp.float32, 5e-5, 5e-5)
    # D that does not divide 128: lane-sparse fallback path.
    _run(1, 2, 16, 96, jnp.float32, 5e-5, 5e-5)
    # Default (device-derived) block budget, larger seq, bh folding.
    _run(2, 4, 1024, 64, jnp.float32, 5e-5, 5e-5)

    print("KERNEL_OK")
</pallas_src>

<mosaic_0001>
module attributes {stable_mosaic.version = 11 : i64} {
  func.func @_mh_rmsnorm_kernel(%arg0: i32, %arg1: i32, %arg2: memref<4x2x128xf32, #tpu.memory_space<vmem>>, %arg3: memref<4x1x128xf32, #tpu.memory_space<vmem>>, %arg4: memref<4x2x128xf32, #tpu.memory_space<vmem>>) attributes {dimension_semantics = [#tpu.dimension_semantics<parallel>, #tpu.dimension_semantics<parallel>], iteration_bounds = array<i64: 2, 1>, scalar_prefetch = 0 : i64, scratch_operands = 0 : i64, tpu.core_type = #tpu.core_type<tc>, window_params = [{transform_indices = @transform_0, window_bounds = array<i64: 4, 2, 128>}, {transform_indices = @transform_1, window_bounds = array<i64: 4, 1, 128>}, {transform_indices = @transform_2, window_bounds = array<i64: 4, 2, 128>}]} {
    %c0 = arith.constant 0 : index
    %c0_0 = arith.constant 0 : index
    %c0_1 = arith.constant 0 : index
    %0 = vector.load %arg2[%c0, %c0_0, %c0_1] : memref<4x2x128xf32, #tpu.memory_space<vmem>>, vector<4x2x128xf32>
    %1 = arith.mulf %0, %0 : vector<4x2x128xf32>
    %2 = tpu.iota {dimensions = array<i32: 2>} : vector<1x1x128xi32>
    %c127_i32 = arith.constant 127 : i32
    %3 = tpu.dynamic_rotate %1 by %c127_i32 dim 2 : vector<4x2x128xf32>, i32 -> vector<4x2x128xf32>
    %c1_i32 = arith.constant 1 : i32
    %4 = tpu.dynamic_rotate %1 by %c1_i32 dim 2 : vector<4x2x128xf32>, i32 -> vector<4x2x128xf32>
    %c1_i32_2 = arith.constant 1 : i32
    %5 = vector.broadcast %c1_i32_2 : i32 to vector<1x1x128xi32>
    %6 = arith.andi %2, %5 : vector<1x1x128xi32>
    %c0_i32 = arith.constant 0 : i32
    %7 = vector.broadcast %c0_i32 : i32 to vector<1x1x128xi32>
    %8 = arith.cmpi eq, %6, %7 : vector<1x1x128xi32>
    %9 = vector.shape_cast %8 : vector<1x1x128xi1> to vector<1x1x128xi1>
    %10 = vector.broadcast %9 : vector<1x1x128xi1> to vector<4x2x128xi1>
    %11 = arith.select %10, %3, %4 : vector<4x2x128xi1>, vector<4x2x128xf32>
    %12 = arith.addf %1, %11 : vector<4x2x128xf32>
    %c126_i32 = arith.constant 126 : i32
    %13 = tpu.dynamic_rotate %12 by %c126_i32 dim 2 : vector<4x2x128xf32>, i32 -> vector<4x2x128xf32>
    %c2_i32 = arith.constant 2 : i32
    %14 = tpu.dynamic_rotate %12 by %c2_i32 dim 2 : vector<4x2x128xf32>, i32 -> vector<4x2x128xf32>
    %c2_i32_3 = arith.constant 2 : i32
    %15 = vector.broadcast %c2_i32_3 : i32 to vector<1x1x128xi32>
    %16 = arith.andi %2, %15 : vector<1x1x128xi32>
    %c0_i32_4 = arith.constant 0 : i32
    %17 = vector.broadcast %c0_i32_4 : i32 to vector<1x1x128xi32>
    %18 = arith.cmpi eq, %16, %17 : vector<1x1x128xi32>
    %19 = vector.shape_cast %18 : vector<1x1x128xi1> to vector<1x1x128xi1>
    %20 = vector.broadcast %19 : vector<1x1x128xi1> to vector<4x2x128xi1>
    %21 = arith.select %20, %13, %14 : vector<4x2x128xi1>, vector<4x2x128xf32>
    %22 = arith.addf %12, %21 : vector<4x2x128xf32>
    %c124_i32 = arith.constant 124 : i32
    %23 = tpu.dynamic_rotate %22 by %c124_i32 dim 2 : vector<4x2x128xf32>, i32 -> vector<4x2x128xf32>
    %c4_i32 = arith.constant 4 : i32
    %24 = tpu.dynamic_rotate %22 by %c4_i32 dim 2 : vector<4x2x128xf32>, i32 -> vector<4x2x128xf32>
    %c4_i32_5 = arith.constant 4 : i32
    %25 = vector.broadcast %c4_i32_5 : i32 to vector<1x1x128xi32>
    %26 = arith.andi %2, %25 : vector<1x1x128xi32>
    %c0_i32_6 = arith.constant 0 : i32
    %27 = vector.broadcast %c0_i32_6 : i32 to vector<1x1x128xi32>
    %28 = arith.cmpi eq, %26, %27 : vector<1x1x128xi32>
    %29 = vector.shape_cast %28 : vector<1x1x128xi1> to vector<1x1x128xi1>
    %30 = vector.broadcast %29 : vector<1x1x128xi1> to vector<4x2x128xi1>
    %31 = arith.select %30, %23, %24 : vector<4x2x128xi1>, vector<4x2x128xf32>
    %32 = arith.addf %22, %31 : vector<4x2x128xf32>
    %c120_i32 = arith.constant 120 : i32
    %33 = tpu.dynamic_rotate %32 by %c120_i32 dim 2 : vector<4x2x128xf32>, i32 -> vector<4x2x128xf32>
    %c8_i32 = arith.constant 8 : i32
    %34 = tpu.dynamic_rotate %32 by %c8_i32 dim 2 : vector<4x2x128xf32>, i32 -> vector<4x2x128xf32>
    %c8_i32_7 = arith.constant 8 : i32
    %35 = vector.broadcast %c8_i32_7 : i32 to vector<1x1x128xi32>
    %36 = arith.andi %2, %35 : vector<1x1x128xi32>
    %c0_i32_8 = arith.constant 0 : i32
    %37 = vector.broadcast %c0_i32_8 : i32 to vector<1x1x128xi32>
    %38 = arith.cmpi eq, %36, %37 : vector<1x1x128xi32>
    %39 = vector.shape_cast %38 : vector<1x1x128xi1> to vector<1x1x128xi1>
    %40 = vector.broadcast %39 : vector<1x1x128xi1> to vector<4x2x128xi1>
    %41 = arith.select %40, %33, %34 : vector<4x2x128xi1>, vector<4x2x128xf32>
    %42 = arith.addf %32, %41 : vector<4x2x128xf32>
    %c112_i32 = arith.constant 112 : i32
    %43 = tpu.dynamic_rotate %42 by %c112_i32 dim 2 : vector<4x2x128xf32>, i32 -> vector<4x2x128xf32>
    %c16_i32 = arith.constant 16 : i32
    %44 = tpu.dynamic_rotate %42 by %c16_i32 dim 2 : vector<4x2x128xf32>, i32 -> vector<4x2x128xf32>
    %c16_i32_9 = arith.constant 16 : i32
    %45 = vector.broadcast %c16_i32_9 : i32 to vector<1x1x128xi32>
    %46 = arith.andi %2, %45 : vector<1x1x128xi32>
    %c0_i32_10 = arith.constant 0 : i32
    %47 = vector.broadcast %c0_i32_10 : i32 to vector<1x1x128xi32>
    %48 = arith.cmpi eq, %46, %47 : vector<1x1x128xi32>
    %49 = vector.shape_cast %48 : vector<1x1x128xi1> to vector<1x1x128xi1>
    %50 = vector.broadcast %49 : vector<1x1x128xi1> to vector<4x2x128xi1>
    %51 = arith.select %50, %43, %44 : vector<4x2x128xi1>, vector<4x2x128xf32>
    %52 = arith.addf %42, %51 : vector<4x2x128xf32>
    %cst = arith.constant 3.125000e-02 : f32
    %53 = vector.broadcast %cst : f32 to vector<4x2x128xf32>
    %54 = arith.mulf %52, %53 : vector<4x2x128xf32>
    %cst_11 = arith.constant 1.1920929E-7 : f32
    %55 = vector.broadcast %cst_11 : f32 to vector<4x2x128xf32>
    %56 = arith.addf %54, %55 : vector<4x2x128xf32>
    %57 = math.rsqrt %56 : vector<4x2x128xf32>
    %c0_12 = arith.constant 0 : index
    %c0_13 = arith.constant 0 : index
    %c0_14 = arith.constant 0 : index
    %58 = vector.load %arg3[%c0_12, %c0_13, %c0_14] : memref<4x1x128xf32, #tpu.memory_space<vmem>>, vector<4x1x128xf32>
    %cst_15 = arith.constant 1.000000e+00 : f32
    %59 = vector.broadcast %cst_15 : f32 to vector<4x1x128xf32>
    %60 = arith.addf %58, %59 : vector<4x1x128xf32>
    %61 = arith.mulf %0, %57 : vector<4x2x128xf32>
    %62 = vector.broadcast %60 : vector<4x1x128xf32> to vector<4x2x128xf32>
    %63 = arith.mulf %61, %62 : vector<4x2x128xf32>
    %c0_16 = arith.constant 0 : index
    %c0_17 = arith.constant 0 : index
    %c0_18 = arith.constant 0 : index
    %64 = vector.load %arg4[%c0_16, %c0_17, %c0_18] : memref<4x2x128xf32, #tpu.memory_space<vmem>>, vector<4x2x128xf32>
    tpu.vector_store %arg4[%c0_16, %c0_17, %c0_18], %63 {strides = array<i32>} : memref<4x2x128xf32, #tpu.memory_space<vmem>>, vector<4x2x128xf32>,
    return
  }
  func.func @transform_0(%arg0: i32, %arg1: i32) -> (i32, i32, i32) {
    %c0_i32 = arith.constant 0 : i32
    %c0_i32_0 = arith.constant 0 : i32
    return %arg0, %arg1, %c0_i32 : i32, i32, i32
  }
  func.func @transform_1(%arg0: i32, %arg1: i32) -> (i32, i32, i32) {
    %c0_i32 = arith.constant 0 : i32
    %c0_i32_0 = arith.constant 0 : i32
    %c0_i32_1 = arith.constant 0 : i32
    return %arg0, %c0_i32, %c0_i32_0 : i32, i32, i32
  }
  func.func @transform_2(%arg0: i32, %arg1: i32) -> (i32, i32, i32) {
    %c0_i32 = arith.constant 0 : i32
    %c0_i32_0 = arith.constant 0 : i32
    return %arg0, %arg1, %c0_i32 : i32, i32, i32
  }
}

</mosaic_0001>

<llo_original>
// kernel: tpu_custom_call.1
$region0: #{tpu_custom_call.1}
  #allocation0 [shape = 'u32[]', space=smem, size = 0x4, offset = 0x4, fixed_abs, tag = 'smem constant byte address 0x4 - core index']
  #allocation1 [shape = 'u32[144,128]{1,0:T(1,128)}', space=vmem, size = 0x12000, scoped, tag = 'internal scratch']
  %s0 = inlined_call_operand.hbm [shape: f32[8,2,128], index: 0, kind: input, shape index: {}]
  %s1 = inlined_call_operand.hbm [shape: f32[8,1,128], index: 1, kind: input, shape index: {}]
  %s2 = inlined_call_operand.hbm [shape: f32[8,2,128], index: 2, kind: output, shape index: {}]
  %s3 = sld [smem:[#allocation0]]
  $region49: #{tpu_custom_call.1} parent=0
    _
  %s5 = ssub.s32 1, %s3
  %s6 = scalar_select 0, %s5, %s3
  $region1: #{tpu_custom_call.1} parent=0
    #allocation2 [shape = 'u8[8192]{0}', space=vmem, size = 0x2000, scoped, tag = 'input window, operand 0']
    #allocation3 [shape = 's32[2]{0}', space=sflag, size = 0x8, scoped, tag = 'scoped memory for tpu_custom_call.1']
    #allocation4 [shape = 's32[2]{0}', space=sflag, size = 0x8, scoped, tag = 'scoped memory for tpu_custom_call.1']
    #allocation5 [shape = 'u8[4096]{0}', space=vmem, size = 0x1000, scoped, tag = 'input window, operand 1']
    #allocation6 [shape = 's32[2]{0}', space=sflag, size = 0x8, scoped, tag = 'scoped memory for tpu_custom_call.1']
    #allocation7 [shape = 'u8[8192]{0}', space=vmem, size = 0x2000, scoped, tag = 'output window, operand 0']
    %7 = vsyncpa [#allocation3], 0
    %s8 = scalar_lea.sflag [#allocation3], 1
    %9 = vsyncpa %s8, 0
    %10 = vsyncpa [#allocation6], 0
    %s11 = scalar_lea.sflag [#allocation6], 1
    %12 = vsyncpa %s11, 0
    %13 = vsyncpa [#allocation4], 0
    %s14 = scalar_lea.sflag [#allocation4], 1
    %15 = vsyncpa %s14, 0
    loop: start=0, step=1, limit=4
    $region2: #{tpu_custom_call.1} parent=1 // loop_pre_header
      _
    $region3: #{tpu_custom_call.1} parent=1 // loop_header
      %s17 = sphi 0, %s21
      %p18 = scmp.ge.s32.totalorder %s17, 4
      %s24 = sphi 0, %s36
      %s25 = sphi 0, %s32
      %s26 = sphi 0, %s24
      %s27 = sphi 0, %s25
      %s28 = sphi 0, %s26
      %s29 = sphi 0, %s27
      %s41 = sphi 0, %s43
      %s44 = sphi 0, %s41
      %s45 = sphi 0, %s44
      %s61 = sphi 0, %s45
      %s67 = sphi 0, %s69
      %s70 = sphi 0, %s67
      %s71 = sphi 0, %s70
      %s87 = sphi 0, %s71
      %s95 = sphi 0, %s97
      %s98 = sphi 0, %s95
      %s99 = sphi 0, %s98
      %s115 = sphi 0, %s99
    $region4: #{tpu_custom_call.1} parent=1 // loop_header_branch
      %20 = sbr.rel (%p18) target = $region8
    $region5: #{tpu_custom_call.1} parent=1 // loop_body
      %s22 = ssub.s32 %s17, 1
      %s23 = ssub.s32 %s17, 2
      %s30 = sadd.s32 1, %s25
      %p31 = scmp.ge.s32.totalorder %s30, 1
      %s32 = scalar_select %p31, 0, %s30
      %s33 = sadd.s32 1, %s24
      %s34 = scalar_select %p31, %s33, %s24
      %p35 = scmp.ge.s32.totalorder %s34, 2
      %s36 = scalar_select %p35, 0, %s34
      %s37 = ssub.s32 %s24, %s36
      %s38 = ssub.s32 %s25, %s32
      %s39 = sor.u32 %s37, %s38
      %p40 = scmp.eq.s32.totalorder %s39, 0
      %s42 = sadd.s32 %s41, 1
      %s43 = scalar_select %p40, %s41, %s42
      %p46 = pneg %p40
      %p47 = scmp.eq.s32.totalorder %s17, 1
      %p48 = por %p46, %p47
      %p49 = scmp.ne.s32.totalorder %s41, %s44
      %p50 = scmp.eq.s32.totalorder %s17, 0
      %p51 = por %p49, %p50
      %p52 = scmp.ne.s32.totalorder %s41, %s44
      %p53 = scmp.eq.s32.totalorder %s22, 1
      %p54 = por %p52, %p53
      %p55 = scmp.ne.s32.totalorder %s44, %s45
      %p56 = scmp.eq.s32.totalorder %s22, 0
      %p57 = por %p55, %p56
      %p58 = scmp.ne.s32.totalorder %s44, %s45
      %p59 = scmp.eq.s32.totalorder %s23, 1
      %p60 = por %p58, %p59
      %p62 = scmp.ne.s32.totalorder %s45, %s61
      %p63 = scmp.eq.s32.totalorder %s23, 0
      %p64 = por %p62, %p63
      %s65 = ssub.s32 %s24, %s36
      %p66 = scmp.eq.s32.totalorder %s65, 0
      %s68 = sadd.s32 %s67, 1
      %s69 = scalar_select %p66, %s67, %s68
      %p72 = pneg %p66
      %p73 = scmp.eq.s32.totalorder %s17, 1
      %p74 = por %p72, %p73
      %p75 = scmp.ne.s32.totalorder %s67, %s70
      %p76 = scmp.eq.s32.totalorder %s17, 0
      %p77 = por %p75, %p76
      %p78 = scmp.ne.s32.totalorder %s67, %s70
      %p79 = scmp.eq.s32.totalorder %s22, 1
      %p80 = por %p78, %p79
      %p81 = scmp.ne.s32.totalorder %s70, %s71
      %p82 = scmp.eq.s32.totalorder %s22, 0
      %p83 = por %p81, %p82
      %p84 = scmp.ne.s32.totalorder %s70, %s71
      %p85 = scmp.eq.s32.totalorder %s23, 1
      %p86 = por %p84, %p85
      %p88 = scmp.ne.s32.totalorder %s71, %s87
      %p89 = scmp.eq.s32.totalorder %s23, 0
      %p90 = por %p88, %p89
      %s91 = ssub.s32 %s24, %s36
      %s92 = ssub.s32 %s25, %s32
      %s93 = sor.u32 %s91, %s92
      %p94 = scmp.eq.s32.totalorder %s93, 0
      %s96 = sadd.s32 %s95, 1
      %s97 = scalar_select %p94, %s95, %s96
      %p100 = pneg %p94
      %p101 = scmp.eq.s32.totalorder %s17, 1
      %p102 = por %p100, %p101
      %p103 = scmp.ne.s32.totalorder %s95, %s98
      %p104 = scmp.eq.s32.totalorder %s17, 0
      %p105 = por %p103, %p104
      %p106 = scmp.ne.s32.totalorder %s95, %s98
      %p107 = scmp.eq.s32.totalorder %s22, 1
      %p108 = por %p106, %p107
      %p109 = scmp.ne.s32.totalorder %s98, %s99
      %p110 = scmp.eq.s32.totalorder %s22, 0
      %p111 = por %p109, %p110
      %p112 = scmp.ne.s32.totalorder %s98, %s99
      %p113 = scmp.eq.s32.totalorder %s23, 1
      %p114 = por %p112, %p113
      %p116 = scmp.ne.s32.totalorder %s99, %s115
      %p117 = scmp.eq.s32.totalorder %s23, 0
      %p118 = por %p116, %p117
      %p119 = scmp.le.s32.totalorder 1, %s17
      %p120 = scmp.lt.s32.totalorder %s17, 3
      %p121 = pnand %p119, %p120
      %p122 = pneg %p121
      // Predicated region
      $region9: #{tpu_custom_call.1} parent=5 // pred_check
        _
      $region10: #{tpu_custom_call.1} parent=5 // pred_check_branch
        %124 = sbr.rel (%p121) target = $region12
      $region11: #{tpu_custom_call.1} parent=5 // pred_region
        %s125 = ssub.s32 %s17, 1
      $region12: #{tpu_custom_call.1} parent=5 // pred_fallthru
        _
      %p126 = scmp.lt.s32.totalorder %s17, 2
      // Predicated region
      $region13: #{tpu_custom_call.1} parent=5 // pred_check
        %p127 = pneg %p126
      $region14: #{tpu_custom_call.1} parent=5 // pred_check_branch
        %129 = sbr.rel (%p127) target = $region16
      $region15: #{tpu_custom_call.1} parent=5 // pred_region
        // Predicated region
        $region17: #{tpu_custom_call.1} parent=15 // pred_check
          %p130 = pneg %p51
        $region18: #{tpu_custom_call.1} parent=15 // pred_check_branch
          %132 = sbr.rel (%p130) target = $region20
        $region19: #{tpu_custom_call.1} parent=15 // pred_region
          %s133 = sand.u32 %s41, 1
          %s134 = scalar_lea.sflag [#allocation3], %s133
          %s135 = sand.u32 %s41, 1
          %s136 = smul.addr %s135, 8
          %s137 = scalar_lea.vmem [#allocation2], %s136
          %s138 = smul.u32 4, %s24
          %s140 = ssub.s32 128, 128
          %141 = vsyncadd %s134, %s140
          %s142 = sadd.s32 %s25, %s138
          %s143 = smul.addr %s142, 32
          %s144 = scalar_lea.hbm %s0, %s143
          %s145 = sshll.u32 %s137, 4
          %s146 = int_to_ptr.vmem [resolvable:$true] %s145
          %151 = dma.hbm_to_vmem [thread:$0]  %s144, 128, %s146, %s134, 32, 32, 2
        $region20: #{tpu_custom_call.1} parent=15 // pred_fallthru
          _
        // Predicated region
        $region21: #{tpu_custom_call.1} parent=15 // pred_check
          %p152 = pneg %p77
        $region22: #{tpu_custom_call.1} parent=15 // pred_check_branch
          %154 = sbr.rel (%p152) target = $region24
        $region23: #{tpu_custom_call.1} parent=15 // pred_region
          %s155 = sand.u32 %s67, 1
          %s156 = scalar_lea.sflag [#allocation6], %s155
          %s157 = sand.u32 %s67, 1
          %s158 = smul.addr %s157, 4
          %s159 = scalar_lea.vmem [#allocation5], %s158
          %s160 = smul.u32 4, %s24
          %s162 = ssub.s32 64, 64
          %163 = vsyncadd %s156, %s162
          %s164 = smul.addr %s160, 16
          %s165 = scalar_lea.hbm %s1, %s164
          %s166 = sshll.u32 %s159, 4
          %s167 = int_to_ptr.vmem [resolvable:$true] %s166
          %172 = dma.hbm_to_vmem [thread:$0]  %s165, 64, %s167, %s156, 16, 16, 1
        $region24: #{tpu_custom_call.1} parent=15 // pred_fallthru
          _
      $region16: #{tpu_custom_call.1} parent=5 // pred_fallthru
        _
      %p173 = scmp.le.s32.totalorder 1, %s17
      %p174 = scmp.lt.s32.totalorder %s17, 3
      %p175 = pnand %p173, %p174
      %p176 = pneg %p175
      // Predicated region
      $region25: #{tpu_custom_call.1} parent=5 // pred_check
        _
      $region26: #{tpu_custom_call.1} parent=5 // pred_check_branch
        %178 = sbr.rel (%p175) target = $region28
      $region27: #{tpu_custom_call.1} parent=5 // pred_region
        %s179 = ssub.s32 %s17, 1
        %s180 = sand.u32 %s44, 1
        %s181 = scalar_lea.sflag [#allocation3], %s180
        %s182 = sand.u32 %s44, 1
        %s183 = smul.addr %s182, 8
        %s184 = scalar_lea.vmem [#allocation2], %s183
        // Predicated region
        $region29: #{tpu_custom_call.1} parent=27 // pred_check
          %p185 = pneg %p57
        $region30: #{tpu_custom_call.1} parent=27 // pred_check_branch
          %187 = sbr.rel (%p185) target = $region32
        $region31: #{tpu_custom_call.1} parent=27 // pred_region
          %188 = dma.done %s181, 128
        $region32: #{tpu_custom_call.1} parent=27 // pred_fallthru
          _
        %s189 = sand.u32 %s70, 1
        %s190 = scalar_lea.sflag [#allocation6], %s189
        %s191 = sand.u32 %s70, 1
        %s192 = smul.addr %s191, 4
        %s193 = scalar_lea.vmem [#allocation5], %s192
        // Predicated region
        $region33: #{tpu_custom_call.1} parent=27 // pred_check
          %p194 = pneg %p83
        $region34: #{tpu_custom_call.1} parent=27 // pred_check_branch
          %196 = sbr.rel (%p194) target = $region36
        $region35: #{tpu_custom_call.1} parent=27 // pred_region
          %197 = dma.done %s190, 64
        $region36: #{tpu_custom_call.1} parent=27 // pred_fallthru
          _
        %s198 = sand.u32 %s44, 1
        %s199 = scalar_lea.sflag [#allocation3], %s198
        %s200 = sand.u32 %s44, 1
        %s201 = smul.addr %s200, 8
        %s202 = scalar_lea.vmem [#allocation2], %s201
        %p203 = pneg %p57
        %p204 = pneg %p54
        %s205 = sand.u32 %s70, 1
        %s206 = scalar_lea.sflag [#allocation6], %s205
        %s207 = sand.u32 %s70, 1
        %s208 = smul.addr %s207, 4
        %s209 = scalar_lea.vmem [#allocation5], %s208
        %p210 = pneg %p83
        %p211 = pneg %p80
        %p212 = pneg %p111
        %p213 = pneg %p108
        %s214 = sand.u32 %s98, 1
        %s215 = scalar_lea.sflag [#allocation4], %s214
        %s216 = sand.u32 %s98, 1
        %s217 = smul.addr %s216, 8
        %s218 = scalar_lea.vmem [#allocation7], %s217
        %s219 = smul.u32 4, %s26
        %s220 = smul.u32 4, %s26
        %s221 = smul.u32 4, %s26
        %v222 = vld [vmem:[%s184] sm:$0x3]
        %v223 = vld [vmem:[%s184 + $0x2] sm:$0x3]
        %v224 = vld [vmem:[%s184 + $0x4] sm:$0x3]
        %v225 = vld [vmem:[%s184 + $0x6] sm:$0x3]
        %v226 = vmul.f32 %v222, %v222
        %v227 = vmul.f32 %v223, %v223
        %v228 = vmul.f32 %v224, %v224
        %v229 = vmul.f32 %v225, %v225
        %v230 = vlaneseq
        %v231 = vand.u32 %v230, 127
        %232 = vrot.lane.b32.xlu0 %v226, 127
        %v233 = vpop.permute.xlu0 %232
        %234 = vrot.lane.b32.xlu0 %v227, 127
        %v235 = vpop.permute.xlu0 %234
        %236 = vrot.lane.b32.xlu0 %v228, 127
        %v237 = vpop.permute.xlu0 %236
        %238 = vrot.lane.b32.xlu0 %v229, 127
        %v239 = vpop.permute.xlu0 %238
        %240 = vrot.lane.b32.xlu0 %v226, 1
        %v241 = vpop.permute.xlu0 %240
        %242 = vrot.lane.b32.xlu0 %v227, 1
        %v243 = vpop.permute.xlu0 %242
        %244 = vrot.lane.b32.xlu0 %v228, 1
        %v245 = vpop.permute.xlu0 %244
        %246 = vrot.lane.b32.xlu0 %v229, 1
        %v247 = vpop.permute.xlu0 %246
        %v248 = vand.u32 %v231, 1
        %vm249 = vcmp.eq.s32.totalorder %v248, 0
        %v250 = vsel %vm249, 1, 0
        %vm251 = vcmp.eq.s32.totalorder %v250, 1
        %v252 = vsel %vm251, %v233, %v241
        %v253 = vsel %vm251, %v235, %v243
        %v254 = vsel %vm251, %v237, %v245
        %v255 = vsel %vm251, %v239, %v247
        %v256 = vadd.f32 %v226, %v252
        %v257 = vadd.f32 %v227, %v253
        %v258 = vadd.f32 %v228, %v254
        %v259 = vadd.f32 %v229, %v255
        %260 = vrot.lane.b32.xlu0 %v256, 126
        %v261 = vpop.permute.xlu0 %260
        %262 = vrot.lane.b32.xlu0 %v257, 126
        %v263 = vpop.permute.xlu0 %262
        %264 = vrot.lane.b32.xlu0 %v258, 126
        %v265 = vpop.permute.xlu0 %264
        %266 = vrot.lane.b32.xlu0 %v259, 126
        %v267 = vpop.permute.xlu0 %266
        %268 = vrot.lane.b32.xlu0 %v256, 2
        %v269 = vpop.permute.xlu0 %268
        %270 = vrot.lane.b32.xlu0 %v257, 2
        %v271 = vpop.permute.xlu0 %270
        %272 = vrot.lane.b32.xlu0 %v258, 2
        %v273 = vpop.permute.xlu0 %272
        %274 = vrot.lane.b32.xlu0 %v259, 2
        %v275 = vpop.permute.xlu0 %274
        %v276 = vand.u32 %v231, 2
        %vm277 = vcmp.eq.s32.totalorder %v276, 0
        %v278 = vsel %vm277, 1, 0
        %vm279 = vcmp.eq.s32.totalorder %v278, 1
        %v280 = vsel %vm279, %v261, %v269
        %v281 = vsel %vm279, %v263, %v271
        %v282 = vsel %vm279, %v265, %v273
        %v283 = vsel %vm279, %v267, %v275
        %v284 = vadd.f32 %v256, %v280
        %v285 = vadd.f32 %v257, %v281
        %v286 = vadd.f32 %v258, %v282
        %v287 = vadd.f32 %v259, %v283
        %288 = vrot.lane.b32.xlu0 %v284, 124
        %v289 = vpop.permute.xlu0 %288
        %290 = vrot.lane.b32.xlu0 %v285, 124
        %v291 = vpop.permute.xlu0 %290
        %292 = vrot.lane.b32.xlu0 %v286, 124
        %v293 = vpop.permute.xlu0 %292
        %294 = vrot.lane.b32.xlu0 %v287, 124
        %v295 = vpop.permute.xlu0 %294
        %296 = vrot.lane.b32.xlu0 %v284, 4
        %v297 = vpop.permute.xlu0 %296
        %298 = vrot.lane.b32.xlu0 %v285, 4
        %v299 = vpop.permute.xlu0 %298
        %300 = vrot.lane.b32.xlu0 %v286, 4
        %v301 = vpop.permute.xlu0 %300
        %302 = vrot.lane.b32.xlu0 %v287, 4
        %v303 = vpop.permute.xlu0 %302
        %v304 = vand.u32 %v231, 4
        %vm305 = vcmp.eq.s32.totalorder %v304, 0
        %v306 = vsel %vm305, 1, 0
        %vm307 = vcmp.eq.s32.totalorder %v306, 1
        %v308 = vsel %vm307, %v289, %v297
        %v309 = vsel %vm307, %v291, %v299
        %v310 = vsel %vm307, %v293, %v301
        %v311 = vsel %vm307, %v295, %v303
        %v312 = vadd.f32 %v284, %v308
        %v313 = vadd.f32 %v285, %v309
        %v314 = vadd.f32 %v286, %v310
        %v315 = vadd.f32 %v287, %v311
        %316 = vrot.lane.b32.xlu0 %v312, 120
        %v317 = vpop.permute.xlu0 %316
        %318 = vrot.lane.b32.xlu0 %v313, 120
        %v319 = vpop.permute.xlu0 %318
        %320 = vrot.lane.b32.xlu0 %v314, 120
        %v321 = vpop.permute.xlu0 %320
        %322 = vrot.lane.b32.xlu0 %v315, 120
        %v323 = vpop.permute.xlu0 %322
        %324 = vrot.lane.b32.xlu0 %v312, 8
        %v325 = vpop.permute.xlu0 %324
        %326 = vrot.lane.b32.xlu0 %v313, 8
        %v327 = vpop.permute.xlu0 %326
        %328 = vrot.lane.b32.xlu0 %v314, 8
        %v329 = vpop.permute.xlu0 %328
        %330 = vrot.lane.b32.xlu0 %v315, 8
        %v331 = vpop.permute.xlu0 %330
        %v332 = vand.u32 %v231, 8
        %vm333 = vcmp.eq.s32.totalorder %v332, 0
        %v334 = vsel %vm333, 1, 0
        %vm335 = vcmp.eq.s32.totalorder %v334, 1
        %v336 = vsel %vm335, %v317, %v325
        %v337 = vsel %vm335, %v319, %v327
        %v338 = vsel %vm335, %v321, %v329
        %v339 = vsel %vm335, %v323, %v331
        %v340 = vadd.f32 %v312, %v336
        %v341 = vadd.f32 %v313, %v337
        %v342 = vadd.f32 %v314, %v338
        %v343 = vadd.f32 %v315, %v339
        %344 = vrot.lane.b32.xlu0 %v340, 112
        %v345 = vpop.permute.xlu0 %344
        %346 = vrot.lane.b32.xlu0 %v341, 112
        %v347 = vpop.permute.xlu0 %346
        %348 = vrot.lane.b32.xlu0 %v342, 112
        %v349 = vpop.permute.xlu0 %348
        %350 = vrot.lane.b32.xlu0 %v343, 112
        %v351 = vpop.permute.xlu0 %350
        %352 = vrot.lane.b32.xlu0 %v340, 16
        %v353 = vpop.permute.xlu0 %352
        %354 = vrot.lane.b32.xlu0 %v341, 16
        %v355 = vpop.permute.xlu0 %354
        %356 = vrot.lane.b32.xlu0 %v342, 16
        %v357 = vpop.permute.xlu0 %356
        %358 = vrot.lane.b32.xlu0 %v343, 16
        %v359 = vpop.permute.xlu0 %358
        %v360 = vand.u32 %v231, 16
        %vm361 = vcmp.eq.s32.totalorder %v360, 0
        %v362 = vsel %vm361, 1, 0
        %vm363 = vcmp.eq.s32.totalorder %v362, 1
        %v364 = vsel %vm363, %v345, %v353
        %v365 = vsel %vm363, %v347, %v355
        %v366 = vsel %vm363, %v349, %v357
        %v367 = vsel %vm363, %v351, %v359
        %v368 = vadd.f32 %v340, %v364
        %v369 = vadd.f32 %v341, %v365
        %v370 = vadd.f32 %v342, %v366
        %v371 = vadd.f32 %v343, %v367
        %v372 = vmul.f32 %v368, 0.03125
        %v373 = vmul.f32 %v369, 0.03125
        %v374 = vmul.f32 %v370, 0.03125
        %v375 = vmul.f32 %v371, 0.03125
        %v376 = vadd.f32 %v372, 1.1920929e-07
        %v377 = vadd.f32 %v373, 1.1920929e-07
        %v378 = vadd.f32 %v374, 1.1920929e-07
        %v379 = vadd.f32 %v375, 1.1920929e-07
        %v380 = vrsqrt.pop %v376
        %v381 = vrsqrt.pop %v377
        %v382 = vrsqrt.pop %v378
        %v383 = vrsqrt.pop %v379
        %v384 = vld [vmem:[%s193] sm:$0x1]
        %v385 = vld [vmem:[%s193 + $0x1] sm:$0x1]
        %v386 = vld [vmem:[%s193 + $0x2] sm:$0x1]
        %v387 = vld [vmem:[%s193 + $0x3] sm:$0x1]
        %v388 = vadd.f32 %v384, 1.0
        %v389 = vadd.f32 %v385, 1.0
        %v390 = vadd.f32 %v386, 1.0
        %v391 = vadd.f32 %v387, 1.0
        %v392 = vmul.f32 %v222, %v380
        %v393 = vmul.f32 %v223, %v381
        %v394 = vmul.f32 %v224, %v382
        %v395 = vmul.f32 %v225, %v383
        %v400 = vlaneseq
        %v401 = vshrl.u32 %v400, 7
        %v402 = vsub.s32 0, %v401
        %v403 = vrot.slane %v388, %v402
        %v404 = vlaneseq
        %v405 = vshrl.u32 %v404, 7
        %v406 = vsub.s32 0, %v405
        %v407 = vrot.slane %v389, %v406
        %v408 = vlaneseq
        %v409 = vshrl.u32 %v408, 7
        %v410 = vsub.s32 0, %v409
        %v411 = vrot.slane %v390, %v410
        %v412 = vlaneseq
        %v413 = vshrl.u32 %v412, 7
        %v414 = vsub.s32 0, %v413
        %v415 = vrot.slane %v391, %v414
        %v420 = vmul.f32 %v392, %v403
        %v421 = vmul.f32 %v393, %v407
        %v422 = vmul.f32 %v394, %v411
        %v423 = vmul.f32 %v395, %v415
        %424 = vst [vmem:[%s218] sm:$0x3] %v420
        %425 = vst [vmem:[%s218 + $0x2] sm:$0x3] %v421
        %426 = vst [vmem:[%s218 + $0x4] sm:$0x3] %v422
        %427 = vst [vmem:[%s218 + $0x6] sm:$0x3] %v423
        %s428 = sand.u32 %s98, 1
        %s429 = scalar_lea.sflag [#allocation4], %s428
        %s430 = sand.u32 %s98, 1
        %s431 = smul.addr %s430, 8
        %s432 = scalar_lea.vmem [#allocation7], %s431
        // Predicated region
        $region37: #{tpu_custom_call.1} parent=27 // pred_check
          %p433 = pneg %p108
        $region38: #{tpu_custom_call.1} parent=27 // pred_check_branch
          %435 = sbr.rel (%p433) target = $region40
        $region39: #{tpu_custom_call.1} parent=27 // pred_region
          %s436 = smul.u32 4, %s26
          %s438 = ssub.s32 128, 128
          %439 = vsyncadd %s429, %s438
          %s440 = sadd.s32 %s27, %s436
          %s441 = smul.addr %s440, 32
          %s442 = scalar_lea.hbm %s2, %s441
          %s443 = sshll.u32 %s432, 4
          %s444 = int_to_ptr.vmem [resolvable:$true] %s443
          %449 = dma.vmem_to_hbm [thread:$0]  %s444, 128, %s442, %s429, 32, 32, 2
        $region40: #{tpu_custom_call.1} parent=27 // pred_fallthru
          _
      $region28: #{tpu_custom_call.1} parent=5 // pred_fallthru
        _
      %p450 = scmp.le.s32.totalorder 2, %s17
      // Predicated region
      $region41: #{tpu_custom_call.1} parent=5 // pred_check
        %p451 = pneg %p450
      $region42: #{tpu_custom_call.1} parent=5 // pred_check_branch
        %453 = sbr.rel (%p451) target = $region44
      $region43: #{tpu_custom_call.1} parent=5 // pred_region
        %s454 = ssub.s32 %s17, 2
        // Predicated region
        $region45: #{tpu_custom_call.1} parent=43 // pred_check
          %p455 = pneg %p114
        $region46: #{tpu_custom_call.1} parent=43 // pred_check_branch
          %457 = sbr.rel (%p455) target = $region48
        $region47: #{tpu_custom_call.1} parent=43 // pred_region
          %s458 = sand.u32 %s99, 1
          %s459 = scalar_lea.sflag [#allocation4], %s458
          %s460 = sand.u32 %s99, 1
          %s461 = smul.addr %s460, 8
          %s462 = scalar_lea.vmem [#allocation7], %s461
          %463 = dma.done %s459, 128
        $region48: #{tpu_custom_call.1} parent=43 // pred_fallthru
          _
      $region44: #{tpu_custom_call.1} parent=5 // pred_fallthru
        _
    $region6: #{tpu_custom_call.1} parent=1 // loop_footer
      %s21 = sadd.s32 1, %s17
    $region7: #{tpu_custom_call.1} parent=1 // loop_footer_branch
      %16 = sbr.rel target = $region3
    $region8: #{tpu_custom_call.1} parent=1 // loop_exit
      _
    %464 = vsyncpa [#allocation3], 1
    %s465 = scalar_lea.sflag [#allocation3], 1
    %466 = vsyncpa %s465, 1
    %467 = vsyncpa [#allocation6], 1
    %s468 = scalar_lea.sflag [#allocation6], 1
    %469 = vsyncpa %s468, 1
    %470 = vsyncpa [#allocation4], 1
    %s471 = scalar_lea.sflag [#allocation4], 1
    %472 = vsyncpa %s471, 1

</llo_original>
